<compile_context>
chip_gen: v7x
topology: tpu7x:2x2x1
jax: 0.10.0
libtpu: 0.0.40
codegen_flags: <defaults>
</compile_context>

<pallas_src>
import jax
import jax.numpy as jnp
from jax.experimental import pallas as pl
from jax.experimental.pallas import tpu as pltpu

D_IN = 68
D_HIDDEN = 32
NUM_HIDDEN = 10


def _round_up(x, m):
    return ((x + m - 1) // m) * m


def dqn_kernel(x_ref, w_in_ref, b_in_ref, wh_ref, bh_ref, w_out_ref, b_out_ref,
               o_ref):
    # Input layer: bf16 x bf16 matmul on the MXU, f32 accumulation,
    # bias add + ReLU in f32 (v5e has no bf16 VALU).
    h = jnp.dot(x_ref[...], w_in_ref[...], preferred_element_type=jnp.float32)
    h = jnp.maximum(h + b_in_ref[...], 0.0)

    # Hoist the (tiny) bias stack load out of the unrolled loop.
    bh = bh_ref[...]  # (NUM_HIDDEN, 1, D_HIDDEN), f32

    # Hidden stack (static unroll; NUM_HIDDEN is small and known at trace time).
    # Weights are read per-layer from VMEM (cheap vld; avoids vreg pressure).
    for i in range(NUM_HIDDEN):
        h = jnp.dot(h.astype(jnp.bfloat16), wh_ref[i],
                    preferred_element_type=jnp.float32)
        h = jnp.maximum(h + bh[i], 0.0)

    # Output layer (N=1): VPU multiply + XLU lane reduction instead of a
    # degenerate 1-column MXU matmul. w_out is stored as (1, D_HIDDEN).
    out = jnp.sum(h * w_out_ref[...], axis=-1, keepdims=True) + b_out_ref[...]
    o_ref[...] = out.astype(o_ref.dtype)


def dqn_forward(x, params, tile_b=512):
    w_in, b_in, wh, bh, w_out, b_out = params
    B = x.shape[0]

    # Pick a batch tile: multiple of 8 (sublane), capped by the requested tile.
    tile_b = min(tile_b, _round_up(B, 8))
    b_pad = _round_up(B, tile_b)
    if b_pad != B:
        x = jnp.pad(x, ((0, b_pad - B), (0, 0)))

    # bf16 inputs/weights, f32 accumulation inside the kernel.
    x_bf = x.astype(jnp.bfloat16)
    w_in_bf = w_in.astype(jnp.bfloat16)
    wh_bf = wh.astype(jnp.bfloat16)

    grid = (b_pad // tile_b,)

    out = pl.pallas_call(
        dqn_kernel,
        out_shape=jax.ShapeDtypeStruct((b_pad, 1), jnp.float32),
        grid_spec=pltpu.PrefetchScalarGridSpec(
            num_scalar_prefetch=0,
            grid=grid,
            in_specs=[
                # x: streamed / pipelined over the batch grid.
                pl.BlockSpec((tile_b, D_IN), lambda i: (i, 0)),
                # Parameters: constant index_map -> VMEM-resident across steps.
                pl.BlockSpec((D_IN, D_HIDDEN), lambda i: (0, 0)),              # w_in
                pl.BlockSpec((1, D_HIDDEN), lambda i: (0, 0)),                 # b_in
                pl.BlockSpec((NUM_HIDDEN, D_HIDDEN, D_HIDDEN),
                             lambda i: (0, 0, 0)),                             # wh
                pl.BlockSpec((NUM_HIDDEN, 1, D_HIDDEN), lambda i: (0, 0, 0)),  # bh
                pl.BlockSpec((1, D_HIDDEN), lambda i: (0, 0)),                 # w_out
                pl.BlockSpec((1, 1), lambda i: (0, 0)),                        # b_out
            ],
            out_specs=pl.BlockSpec((tile_b, 1), lambda i: (i, 0)),
        ),
        compiler_params=pltpu.CompilerParams(
            dimension_semantics=("parallel",)),
    )(x_bf, w_in_bf, b_in, wh_bf, bh, w_out, b_out)

    return out[:B]


def init_params(key):
    """Deterministic init matching nn.Linear's U(-1/sqrt(fan_in), 1/sqrt(fan_in))."""
    ks = jax.random.split(key, 6)

    def uniform(k, shape, fan_in):
        bound = 1.0 / jnp.sqrt(jnp.float32(fan_in))
        return jax.random.uniform(k, shape, jnp.float32, -bound, bound)

    w_in = uniform(ks[0], (D_IN, D_HIDDEN), D_IN)
    b_in = uniform(ks[1], (1, D_HIDDEN), D_IN)
    wh = uniform(ks[2], (NUM_HIDDEN, D_HIDDEN, D_HIDDEN), D_HIDDEN)
    bh = uniform(ks[3], (NUM_HIDDEN, 1, D_HIDDEN), D_HIDDEN)
    w_out = uniform(ks[4], (1, D_HIDDEN), D_HIDDEN)   # PyTorch layout [1, 32]
    b_out = uniform(ks[5], (1, 1), D_HIDDEN)
    return (w_in, b_in, wh, bh, w_out, b_out)


def dqn_reference(x, params):
    """Pure-JAX reference mirroring the kernel's bf16-weight / f32-accumulate math."""
    w_in, b_in, wh, bh, w_out, b_out = params
    h = jnp.dot(x.astype(jnp.bfloat16), w_in.astype(jnp.bfloat16),
                preferred_element_type=jnp.float32)
    h = jnp.maximum(h + b_in, 0.0)
    for i in range(NUM_HIDDEN):
        h = jnp.dot(h.astype(jnp.bfloat16), wh[i].astype(jnp.bfloat16),
                    preferred_element_type=jnp.float32)
        h = jnp.maximum(h + bh[i], 0.0)
    return jnp.sum(h * w_out, axis=-1, keepdims=True) + b_out


if __name__ == "__main__":
    key = jax.random.PRNGKey(0)
    k_x, k_p = jax.random.split(key)

    # Small test shapes: B=50 with tile_b=16 exercises the batch grid (4 steps),
    # the zero-padding path (50 -> 64), and the resident-weight index_maps.
    B = 50
    x = jax.random.normal(k_x, (B, D_IN), jnp.float32)
    params = init_params(k_p)

    out = dqn_forward(x, params, tile_b=16)
    out = jax.block_until_ready(out)

    ref = dqn_reference(x, params)
    assert out.shape == (B, 1), out.shape
    assert jnp.allclose(out, ref, atol=1e-3, rtol=1e-3), (
        f"max abs diff {jnp.max(jnp.abs(out - ref))}")

    print("KERNEL_OK")
</pallas_src>

<mosaic_0001>
module attributes {stable_mosaic.version = 11 : i64} {
  func.func @dqn_kernel(%arg0: i32, %arg1: memref<16x68xbf16, #tpu.memory_space<vmem>>, %arg2: memref<68x32xbf16, #tpu.memory_space<vmem>>, %arg3: memref<1x32xf32, #tpu.memory_space<vmem>>, %arg4: memref<10x32x32xbf16, #tpu.memory_space<vmem>>, %arg5: memref<10x1x32xf32, #tpu.memory_space<vmem>>, %arg6: memref<1x32xf32, #tpu.memory_space<vmem>>, %arg7: memref<1x1xf32, #tpu.memory_space<vmem>>, %arg8: memref<16x1xf32, #tpu.memory_space<vmem>>) attributes {dimension_semantics = [#tpu.dimension_semantics<parallel>], iteration_bounds = array<i64: 4>, scalar_prefetch = 0 : i64, scratch_operands = 0 : i64, tpu.core_type = #tpu.core_type<tc>, window_params = [{transform_indices = @transform_0, window_bounds = array<i64: 16, 68>}, {pipeline_mode = #tpu.pipeline_mode<synchronous>, transform_indices = @transform_1, window_bounds = array<i64: 68, 32>}, {pipeline_mode = #tpu.pipeline_mode<synchronous>, transform_indices = @transform_2, window_bounds = array<i64: 1, 32>}, {pipeline_mode = #tpu.pipeline_mode<synchronous>, transform_indices = @transform_3, window_bounds = array<i64: 10, 32, 32>}, {pipeline_mode = #tpu.pipeline_mode<synchronous>, transform_indices = @transform_4, window_bounds = array<i64: 10, 1, 32>}, {pipeline_mode = #tpu.pipeline_mode<synchronous>, transform_indices = @transform_5, window_bounds = array<i64: 1, 32>}, {pipeline_mode = #tpu.pipeline_mode<synchronous>, transform_indices = @transform_6, window_bounds = array<i64: 1, 1>}, {transform_indices = @transform_7, window_bounds = array<i64: 16, 1>}]} {
    %c0 = arith.constant 0 : index
    %c0_0 = arith.constant 0 : index
    %0 = vector.load %arg1[%c0, %c0_0] : memref<16x68xbf16, #tpu.memory_space<vmem>>, vector<16x68xbf16>
    %c0_1 = arith.constant 0 : index
    %c0_2 = arith.constant 0 : index
    %1 = vector.load %arg2[%c0_1, %c0_2] : memref<68x32xbf16, #tpu.memory_space<vmem>>, vector<68x32xbf16>
    %cst = arith.constant dense<0.000000e+00> : vector<16x32xf32>
    %2 = tpu.matmul %0, %1, %cst {dimension_numbers = #tpu.dot_dimension_numbers<[1], [0], [0], [1], [0, 0, 1, 1], [], []>} : vector<16x68xbf16>, vector<68x32xbf16>, vector<16x32xf32> -> vector<16x32xf32>
    %c0_3 = arith.constant 0 : index
    %c0_4 = arith.constant 0 : index
    %3 = vector.load %arg3[%c0_3, %c0_4] : memref<1x32xf32, #tpu.memory_space<vmem>>, vector<1x32xf32>
    %4 = vector.broadcast %3 : vector<1x32xf32> to vector<16x32xf32>
    %5 = arith.addf %2, %4 : vector<16x32xf32>
    %cst_5 = arith.constant 0.000000e+00 : f32
    %6 = vector.broadcast %cst_5 : f32 to vector<16x32xf32>
    %7 = arith.maximumf %5, %6 : vector<16x32xf32>
    %c0_6 = arith.constant 0 : index
    %c0_7 = arith.constant 0 : index
    %c0_8 = arith.constant 0 : index
    %8 = vector.load %arg5[%c0_6, %c0_7, %c0_8] : memref<10x1x32xf32, #tpu.memory_space<vmem>>, vector<10x1x32xf32>
    %9 = arith.truncf %7 : vector<16x32xf32> to vector<16x32xbf16>
    %c0_9 = arith.constant 0 : index
    %c0_10 = arith.constant 0 : index
    %c0_11 = arith.constant 0 : index
    %10 = vector.load %arg4[%c0_9, %c0_10, %c0_11] : memref<10x32x32xbf16, #tpu.memory_space<vmem>>, vector<1x32x32xbf16>
    %11 = vector.shape_cast %10 : vector<1x32x32xbf16> to vector<32x32xbf16>
    %cst_12 = arith.constant dense<0.000000e+00> : vector<16x32xf32>
    %12 = tpu.matmul %9, %11, %cst_12 {dimension_numbers = #tpu.dot_dimension_numbers<[1], [0], [0], [1], [0, 0, 1, 1], [], []>} : vector<16x32xbf16>, vector<32x32xbf16>, vector<16x32xf32> -> vector<16x32xf32>
    %13 = vector.extract_strided_slice %8 {offsets = [0, 0, 0], sizes = [1, 1, 32], strides = [1, 1, 1]} : vector<10x1x32xf32> to vector<1x1x32xf32>
    %14 = vector.shape_cast %13 : vector<1x1x32xf32> to vector<1x32xf32>
    %15 = vector.broadcast %14 : vector<1x32xf32> to vector<16x32xf32>
    %16 = arith.addf %12, %15 : vector<16x32xf32>
    %cst_13 = arith.constant 0.000000e+00 : f32
    %17 = vector.broadcast %cst_13 : f32 to vector<16x32xf32>
    %18 = arith.maximumf %16, %17 : vector<16x32xf32>
    %19 = arith.truncf %18 : vector<16x32xf32> to vector<16x32xbf16>
    %c1 = arith.constant 1 : index
    %c0_14 = arith.constant 0 : index
    %c0_15 = arith.constant 0 : index
    %20 = vector.load %arg4[%c1, %c0_14, %c0_15] : memref<10x32x32xbf16, #tpu.memory_space<vmem>>, vector<1x32x32xbf16>
    %21 = vector.shape_cast %20 : vector<1x32x32xbf16> to vector<32x32xbf16>
    %cst_16 = arith.constant dense<0.000000e+00> : vector<16x32xf32>
    %22 = tpu.matmul %19, %21, %cst_16 {dimension_numbers = #tpu.dot_dimension_numbers<[1], [0], [0], [1], [0, 0, 1, 1], [], []>} : vector<16x32xbf16>, vector<32x32xbf16>, vector<16x32xf32> -> vector<16x32xf32>
    %23 = vector.extract_strided_slice %8 {offsets = [1, 0, 0], sizes = [1, 1, 32], strides = [1, 1, 1]} : vector<10x1x32xf32> to vector<1x1x32xf32>
    %24 = vector.shape_cast %23 : vector<1x1x32xf32> to vector<1x32xf32>
    %25 = vector.broadcast %24 : vector<1x32xf32> to vector<16x32xf32>
    %26 = arith.addf %22, %25 : vector<16x32xf32>
    %cst_17 = arith.constant 0.000000e+00 : f32
    %27 = vector.broadcast %cst_17 : f32 to vector<16x32xf32>
    %28 = arith.maximumf %26, %27 : vector<16x32xf32>
    %29 = arith.truncf %28 : vector<16x32xf32> to vector<16x32xbf16>
    %c2 = arith.constant 2 : index
    %c0_18 = arith.constant 0 : index
    %c0_19 = arith.constant 0 : index
    %30 = vector.load %arg4[%c2, %c0_18, %c0_19] : memref<10x32x32xbf16, #tpu.memory_space<vmem>>, vector<1x32x32xbf16>
    %31 = vector.shape_cast %30 : vector<1x32x32xbf16> to vector<32x32xbf16>
    %cst_20 = arith.constant dense<0.000000e+00> : vector<16x32xf32>
    %32 = tpu.matmul %29, %31, %cst_20 {dimension_numbers = #tpu.dot_dimension_numbers<[1], [0], [0], [1], [0, 0, 1, 1], [], []>} : vector<16x32xbf16>, vector<32x32xbf16>, vector<16x32xf32> -> vector<16x32xf32>
    %33 = vector.extract_strided_slice %8 {offsets = [2, 0, 0], sizes = [1, 1, 32], strides = [1, 1, 1]} : vector<10x1x32xf32> to vector<1x1x32xf32>
    %34 = vector.shape_cast %33 : vector<1x1x32xf32> to vector<1x32xf32>
    %35 = vector.broadcast %34 : vector<1x32xf32> to vector<16x32xf32>
    %36 = arith.addf %32, %35 : vector<16x32xf32>
    %cst_21 = arith.constant 0.000000e+00 : f32
    %37 = vector.broadcast %cst_21 : f32 to vector<16x32xf32>
    %38 = arith.maximumf %36, %37 : vector<16x32xf32>
    %39 = arith.truncf %38 : vector<16x32xf32> to vector<16x32xbf16>
    %c3 = arith.constant 3 : index
    %c0_22 = arith.constant 0 : index
    %c0_23 = arith.constant 0 : index
    %40 = vector.load %arg4[%c3, %c0_22, %c0_23] : memref<10x32x32xbf16, #tpu.memory_space<vmem>>, vector<1x32x32xbf16>
    %41 = vector.shape_cast %40 : vector<1x32x32xbf16> to vector<32x32xbf16>
    %cst_24 = arith.constant dense<0.000000e+00> : vector<16x32xf32>
    %42 = tpu.matmul %39, %41, %cst_24 {dimension_numbers = #tpu.dot_dimension_numbers<[1], [0], [0], [1], [0, 0, 1, 1], [], []>} : vector<16x32xbf16>, vector<32x32xbf16>, vector<16x32xf32> -> vector<16x32xf32>
    %43 = vector.extract_strided_slice %8 {offsets = [3, 0, 0], sizes = [1, 1, 32], strides = [1, 1, 1]} : vector<10x1x32xf32> to vector<1x1x32xf32>
    %44 = vector.shape_cast %43 : vector<1x1x32xf32> to vector<1x32xf32>
    %45 = vector.broadcast %44 : vector<1x32xf32> to vector<16x32xf32>
    %46 = arith.addf %42, %45 : vector<16x32xf32>
    %cst_25 = arith.constant 0.000000e+00 : f32
    %47 = vector.broadcast %cst_25 : f32 to vector<16x32xf32>
    %48 = arith.maximumf %46, %47 : vector<16x32xf32>
    %49 = arith.truncf %48 : vector<16x32xf32> to vector<16x32xbf16>
    %c4 = arith.constant 4 : index
    %c0_26 = arith.constant 0 : index
    %c0_27 = arith.constant 0 : index
    %50 = vector.load %arg4[%c4, %c0_26, %c0_27] : memref<10x32x32xbf16, #tpu.memory_space<vmem>>, vector<1x32x32xbf16>
    %51 = vector.shape_cast %50 : vector<1x32x32xbf16> to vector<32x32xbf16>
    %cst_28 = arith.constant dense<0.000000e+00> : vector<16x32xf32>
    %52 = tpu.matmul %49, %51, %cst_28 {dimension_numbers = #tpu.dot_dimension_numbers<[1], [0], [0], [1], [0, 0, 1, 1], [], []>} : vector<16x32xbf16>, vector<32x32xbf16>, vector<16x32xf32> -> vector<16x32xf32>
    %53 = vector.extract_strided_slice %8 {offsets = [4, 0, 0], sizes = [1, 1, 32], strides = [1, 1, 1]} : vector<10x1x32xf32> to vector<1x1x32xf32>
    %54 = vector.shape_cast %53 : vector<1x1x32xf32> to vector<1x32xf32>
    %55 = vector.broadcast %54 : vector<1x32xf32> to vector<16x32xf32>
    %56 = arith.addf %52, %55 : vector<16x32xf32>
    %cst_29 = arith.constant 0.000000e+00 : f32
    %57 = vector.broadcast %cst_29 : f32 to vector<16x32xf32>
    %58 = arith.maximumf %56, %57 : vector<16x32xf32>
    %59 = arith.truncf %58 : vector<16x32xf32> to vector<16x32xbf16>
    %c5 = arith.constant 5 : index
    %c0_30 = arith.constant 0 : index
    %c0_31 = arith.constant 0 : index
    %60 = vector.load %arg4[%c5, %c0_30, %c0_31] : memref<10x32x32xbf16, #tpu.memory_space<vmem>>, vector<1x32x32xbf16>
    %61 = vector.shape_cast %60 : vector<1x32x32xbf16> to vector<32x32xbf16>
    %cst_32 = arith.constant dense<0.000000e+00> : vector<16x32xf32>
    %62 = tpu.matmul %59, %61, %cst_32 {dimension_numbers = #tpu.dot_dimension_numbers<[1], [0], [0], [1], [0, 0, 1, 1], [], []>} : vector<16x32xbf16>, vector<32x32xbf16>, vector<16x32xf32> -> vector<16x32xf32>
    %63 = vector.extract_strided_slice %8 {offsets = [5, 0, 0], sizes = [1, 1, 32], strides = [1, 1, 1]} : vector<10x1x32xf32> to vector<1x1x32xf32>
    %64 = vector.shape_cast %63 : vector<1x1x32xf32> to vector<1x32xf32>
    %65 = vector.broadcast %64 : vector<1x32xf32> to vector<16x32xf32>
    %66 = arith.addf %62, %65 : vector<16x32xf32>
    %cst_33 = arith.constant 0.000000e+00 : f32
    %67 = vector.broadcast %cst_33 : f32 to vector<16x32xf32>
    %68 = arith.maximumf %66, %67 : vector<16x32xf32>
    %69 = arith.truncf %68 : vector<16x32xf32> to vector<16x32xbf16>
    %c6 = arith.constant 6 : index
    %c0_34 = arith.constant 0 : index
    %c0_35 = arith.constant 0 : index
    %70 = vector.load %arg4[%c6, %c0_34, %c0_35] : memref<10x32x32xbf16, #tpu.memory_space<vmem>>, vector<1x32x32xbf16>
    %71 = vector.shape_cast %70 : vector<1x32x32xbf16> to vector<32x32xbf16>
    %cst_36 = arith.constant dense<0.000000e+00> : vector<16x32xf32>
    %72 = tpu.matmul %69, %71, %cst_36 {dimension_numbers = #tpu.dot_dimension_numbers<[1], [0], [0], [1], [0, 0, 1, 1], [], []>} : vector<16x32xbf16>, vector<32x32xbf16>, vector<16x32xf32> -> vector<16x32xf32>
    %73 = vector.extract_strided_slice %8 {offsets = [6, 0, 0], sizes = [1, 1, 32], strides = [1, 1, 1]} : vector<10x1x32xf32> to vector<1x1x32xf32>
    %74 = vector.shape_cast %73 : vector<1x1x32xf32> to vector<1x32xf32>
    %75 = vector.broadcast %74 : vector<1x32xf32> to vector<16x32xf32>
    %76 = arith.addf %72, %75 : vector<16x32xf32>
    %cst_37 = arith.constant 0.000000e+00 : f32
    %77 = vector.broadcast %cst_37 : f32 to vector<16x32xf32>
    %78 = arith.maximumf %76, %77 : vector<16x32xf32>
    %79 = arith.truncf %78 : vector<16x32xf32> to vector<16x32xbf16>
    %c7 = arith.constant 7 : index
    %c0_38 = arith.constant 0 : index
    %c0_39 = arith.constant 0 : index
    %80 = vector.load %arg4[%c7, %c0_38, %c0_39] : memref<10x32x32xbf16, #tpu.memory_space<vmem>>, vector<1x32x32xbf16>
    %81 = vector.shape_cast %80 : vector<1x32x32xbf16> to vector<32x32xbf16>
    %cst_40 = arith.constant dense<0.000000e+00> : vector<16x32xf32>
    %82 = tpu.matmul %79, %81, %cst_40 {dimension_numbers = #tpu.dot_dimension_numbers<[1], [0], [0], [1], [0, 0, 1, 1], [], []>} : vector<16x32xbf16>, vector<32x32xbf16>, vector<16x32xf32> -> vector<16x32xf32>
    %83 = vector.extract_strided_slice %8 {offsets = [7, 0, 0], sizes = [1, 1, 32], strides = [1, 1, 1]} : vector<10x1x32xf32> to vector<1x1x32xf32>
    %84 = vector.shape_cast %83 : vector<1x1x32xf32> to vector<1x32xf32>
    %85 = vector.broadcast %84 : vector<1x32xf32> to vector<16x32xf32>
    %86 = arith.addf %82, %85 : vector<16x32xf32>
    %cst_41 = arith.constant 0.000000e+00 : f32
    %87 = vector.broadcast %cst_41 : f32 to vector<16x32xf32>
    %88 = arith.maximumf %86, %87 : vector<16x32xf32>
    %89 = arith.truncf %88 : vector<16x32xf32> to vector<16x32xbf16>
    %c8 = arith.constant 8 : index
    %c0_42 = arith.constant 0 : index
    %c0_43 = arith.constant 0 : index
    %90 = vector.load %arg4[%c8, %c0_42, %c0_43] : memref<10x32x32xbf16, #tpu.memory_space<vmem>>, vector<1x32x32xbf16>
    %91 = vector.shape_cast %90 : vector<1x32x32xbf16> to vector<32x32xbf16>
    %cst_44 = arith.constant dense<0.000000e+00> : vector<16x32xf32>
    %92 = tpu.matmul %89, %91, %cst_44 {dimension_numbers = #tpu.dot_dimension_numbers<[1], [0], [0], [1], [0, 0, 1, 1], [], []>} : vector<16x32xbf16>, vector<32x32xbf16>, vector<16x32xf32> -> vector<16x32xf32>
    %93 = vector.extract_strided_slice %8 {offsets = [8, 0, 0], sizes = [1, 1, 32], strides = [1, 1, 1]} : vector<10x1x32xf32> to vector<1x1x32xf32>
    %94 = vector.shape_cast %93 : vector<1x1x32xf32> to vector<1x32xf32>
    %95 = vector.broadcast %94 : vector<1x32xf32> to vector<16x32xf32>
    %96 = arith.addf %92, %95 : vector<16x32xf32>
    %cst_45 = arith.constant 0.000000e+00 : f32
    %97 = vector.broadcast %cst_45 : f32 to vector<16x32xf32>
    %98 = arith.maximumf %96, %97 : vector<16x32xf32>
    %99 = arith.truncf %98 : vector<16x32xf32> to vector<16x32xbf16>
    %c9 = arith.constant 9 : index
    %c0_46 = arith.constant 0 : index
    %c0_47 = arith.constant 0 : index
    %100 = vector.load %arg4[%c9, %c0_46, %c0_47] : memref<10x32x32xbf16, #tpu.memory_space<vmem>>, vector<1x32x32xbf16>
    %101 = vector.shape_cast %100 : vector<1x32x32xbf16> to vector<32x32xbf16>
    %cst_48 = arith.constant dense<0.000000e+00> : vector<16x32xf32>
    %102 = tpu.matmul %99, %101, %cst_48 {dimension_numbers = #tpu.dot_dimension_numbers<[1], [0], [0], [1], [0, 0, 1, 1], [], []>} : vector<16x32xbf16>, vector<32x32xbf16>, vector<16x32xf32> -> vector<16x32xf32>
    %103 = vector.extract_strided_slice %8 {offsets = [9, 0, 0], sizes = [1, 1, 32], strides = [1, 1, 1]} : vector<10x1x32xf32> to vector<1x1x32xf32>
    %104 = vector.shape_cast %103 : vector<1x1x32xf32> to vector<1x32xf32>
    %105 = vector.broadcast %104 : vector<1x32xf32> to vector<16x32xf32>
    %106 = arith.addf %102, %105 : vector<16x32xf32>
    %cst_49 = arith.constant 0.000000e+00 : f32
    %107 = vector.broadcast %cst_49 : f32 to vector<16x32xf32>
    %108 = arith.maximumf %106, %107 : vector<16x32xf32>
    %c0_50 = arith.constant 0 : index
    %c0_51 = arith.constant 0 : index
    %109 = vector.load %arg6[%c0_50, %c0_51] : memref<1x32xf32, #tpu.memory_space<vmem>>, vector<1x32xf32>
    %110 = vector.broadcast %109 : vector<1x32xf32> to vector<16x32xf32>
    %111 = arith.mulf %108, %110 : vector<16x32xf32>
    %cst_52 = arith.constant dense<0.000000e+00> : vector<16xf32>
    %112 = vector.multi_reduction <add>, %111, %cst_52 [1] : vector<16x32xf32> to vector<16xf32>
    %113 = vector.shape_cast %112 : vector<16xf32> to vector<16x1xf32>
    %c0_53 = arith.constant 0 : index
    %c0_54 = arith.constant 0 : index
    %114 = vector.load %arg7[%c0_53, %c0_54] : memref<1x1xf32, #tpu.memory_space<vmem>>, vector<1x1xf32>
    %115 = vector.broadcast %114 : vector<1x1xf32> to vector<16x1xf32>
    %116 = arith.addf %113, %115 : vector<16x1xf32>
    %c0_55 = arith.constant 0 : index
    %c0_56 = arith.constant 0 : index
    %117 = vector.load %arg8[%c0_55, %c0_56] : memref<16x1xf32, #tpu.memory_space<vmem>>, vector<16x1xf32>
    tpu.vector_store %arg8[%c0_55, %c0_56], %116 {strides = array<i32>} : memref<16x1xf32, #tpu.memory_space<vmem>>, vector<16x1xf32>,
    return
  }
  func.func @transform_0(%arg0: i32) -> (i32, i32) {
    %c0_i32 = arith.constant 0 : i32
    %c0_i32_0 = arith.constant 0 : i32
    return %arg0, %c0_i32 : i32, i32
  }
  func.func @transform_1(%arg0: i32) -> (i32, i32) {
    %c0_i32 = arith.constant 0 : i32
    %c0_i32_0 = arith.constant 0 : i32
    %c0_i32_1 = arith.constant 0 : i32
    return %c0_i32, %c0_i32_0 : i32, i32
  }
  func.func @transform_2(%arg0: i32) -> (i32, i32) {
    %c0_i32 = arith.constant 0 : i32
    %c0_i32_0 = arith.constant 0 : i32
    %c0_i32_1 = arith.constant 0 : i32
    return %c0_i32, %c0_i32_0 : i32, i32
  }
  func.func @transform_3(%arg0: i32) -> (i32, i32, i32) {
    %c0_i32 = arith.constant 0 : i32
    %c0_i32_0 = arith.constant 0 : i32
    %c0_i32_1 = arith.constant 0 : i32
    %c0_i32_2 = arith.constant 0 : i32
    return %c0_i32, %c0_i32_0, %c0_i32_1 : i32, i32, i32
  }
  func.func @transform_4(%arg0: i32) -> (i32, i32, i32) {
    %c0_i32 = arith.constant 0 : i32
    %c0_i32_0 = arith.constant 0 : i32
    %c0_i32_1 = arith.constant 0 : i32
    %c0_i32_2 = arith.constant 0 : i32
    return %c0_i32, %c0_i32_0, %c0_i32_1 : i32, i32, i32
  }
  func.func @transform_5(%arg0: i32) -> (i32, i32) {
    %c0_i32 = arith.constant 0 : i32
    %c0_i32_0 = arith.constant 0 : i32
    %c0_i32_1 = arith.constant 0 : i32
    return %c0_i32, %c0_i32_0 : i32, i32
  }
  func.func @transform_6(%arg0: i32) -> (i32, i32) {
    %c0_i32 = arith.constant 0 : i32
    %c0_i32_0 = arith.constant 0 : i32
    %c0_i32_1 = arith.constant 0 : i32
    return %c0_i32, %c0_i32_0 : i32, i32
  }
  func.func @transform_7(%arg0: i32) -> (i32, i32) {
    %c0_i32 = arith.constant 0 : i32
    %c0_i32_0 = arith.constant 0 : i32
    return %arg0, %c0_i32 : i32, i32
  }
}

</mosaic_0001>

<llo_original>
// kernel: tpu_custom_call.1
$region0: #{tpu_custom_call.1}
  #allocation0 [shape = 'u32[]', space=smem, size = 0x4, offset = 0x4, fixed_abs, tag = 'smem constant byte address 0x4 - core index']
  #allocation1 [shape = 'u32[144,128]{1,0:T(1,128)}', space=vmem, size = 0x12000, scoped, tag = 'internal scratch']
  #allocation2 [shape = 'f32[1,1]{1,0:T(1,128)S(1)}', space=vmem, size = 0x200, scoped, tag = 'scoped memory for tpu_custom_call.1']
  %s0 = inlined_call_operand.vmem [shape: bf16[64,68], index: 0, kind: input, shape index: {}]
  %s1 = inlined_call_operand.vmem [shape: bf16[68,32], index: 1, kind: input, shape index: {}]
  %s2 = inlined_call_operand.vmem [shape: f32[1,32], index: 2, kind: input, shape index: {}]
  %s3 = inlined_call_operand.hbm [shape: bf16[10,32,32], index: 3, kind: input, shape index: {}]
  %s4 = inlined_call_operand.vmem [shape: f32[10,1,32], index: 4, kind: input, shape index: {}]
  %s5 = inlined_call_operand.vmem [shape: f32[1,32], index: 5, kind: input, shape index: {}]
  %s6 = inlined_call_operand.<no memory space> [shape: f32[1,1], index: 6, kind: input, shape index: {}]
  %s7 = inlined_call_operand.vmem [shape: f32[64,1], index: 7, kind: output, shape index: {}]
  %s8 = sld [smem:[#allocation0]]
  $region65: #{tpu_custom_call.1} parent=0
    _
  %s10 = ssub.s32 1, %s8
  %s11 = scalar_select 0, %s10, %s8
  %v12 = vstv %s6
  %13 = vst [vmem:[#allocation2] sm:$0x1] %v12
  $region1: #{tpu_custom_call.1} parent=0
    #allocation3 [shape = 'u8[81920]{0}', space=vmem, size = 0x14000, scoped, tag = 'input window, operand 3, single buffered']
    #allocation4 [shape = 's32[2]{0}', space=sflag, size = 0x8, scoped, tag = 'scoped memory for tpu_custom_call.1']
    %14 = vsyncpa [#allocation4], 0
    loop: start=0, step=1, limit=6
    $region2: #{tpu_custom_call.1} parent=1 // loop_pre_header
      _
    $region3: #{tpu_custom_call.1} parent=1 // loop_header
      %s16 = sphi 0, %s20
      %p17 = scmp.ge.s32.totalorder %s16, 6
      %s26 = sphi 0, %s28
      %s29 = sphi 0, %s26
      %s30 = sphi 0, %s29
      %s46 = sphi 0, %s30
      %s50 = sphi 0, %s50
      %s52 = sphi 0, %s50
      %s53 = sphi 0, %s52
      %s67 = sphi 0, %s53
      %s71 = sphi 0, %s71
      %s73 = sphi 0, %s71
      %s74 = sphi 0, %s73
      %s88 = sphi 0, %s74
      %s92 = sphi 0, %s92
      %s94 = sphi 0, %s92
      %s95 = sphi 0, %s94
      %s109 = sphi 0, %s95
      %s113 = sphi 0, %s113
      %s115 = sphi 0, %s113
      %s116 = sphi 0, %s115
      %s130 = sphi 0, %s116
      %s134 = sphi 0, %s134
      %s136 = sphi 0, %s134
      %s137 = sphi 0, %s136
      %s151 = sphi 0, %s137
      %s155 = sphi 0, %s155
      %s157 = sphi 0, %s155
      %s158 = sphi 0, %s157
      %s172 = sphi 0, %s158
      %s178 = sphi 0, %s180
      %s181 = sphi 0, %s178
      %s182 = sphi 0, %s181
      %s198 = sphi 0, %s182
    $region4: #{tpu_custom_call.1} parent=1 // loop_header_branch
      %19 = sbr.rel (%p17) target = $region8
    $region5: #{tpu_custom_call.1} parent=1 // loop_body
      %s21 = ssub.s32 %s16, 1
      %s22 = ssub.s32 %s16, 2
      %s23 = sadd.s32 %s16, 1
      %s24 = ssub.s32 %s16, %s23
      %p25 = scmp.eq.s32.totalorder %s24, 0
      %s27 = sadd.s32 %s26, 1
      %s28 = scalar_select %p25, %s26, %s27
      %p31 = pneg %p25
      %p32 = scmp.eq.s32.totalorder %s16, 3
      %p33 = por %p31, %p32
      %p34 = scmp.ne.s32.totalorder %s26, %s29
      %p35 = scmp.eq.s32.totalorder %s16, 0
      %p36 = por %p34, %p35
      %p37 = scmp.ne.s32.totalorder %s26, %s29
      %p38 = scmp.eq.s32.totalorder %s21, 3
      %p39 = por %p37, %p38
      %p40 = scmp.ne.s32.totalorder %s29, %s30
      %p41 = scmp.eq.s32.totalorder %s21, 0
      %p42 = por %p40, %p41
      %p43 = scmp.ne.s32.totalorder %s29, %s30
      %p44 = scmp.eq.s32.totalorder %s22, 3
      %p45 = por %p43, %p44
      %p47 = scmp.ne.s32.totalorder %s30, %s46
      %p48 = scmp.eq.s32.totalorder %s22, 0
      %p49 = por %p47, %p48
      %s51 = sadd.s32 %s50, 1
      %p54 = scmp.eq.s32.totalorder %s16, 3
      %p55 = scmp.ne.s32.totalorder %s50, %s52
      %p56 = scmp.eq.s32.totalorder %s16, 0
      %p57 = por %p55, %p56
      %p58 = scmp.ne.s32.totalorder %s50, %s52
      %p59 = scmp.eq.s32.totalorder %s21, 3
      %p60 = por %p58, %p59
      %p61 = scmp.ne.s32.totalorder %s52, %s53
      %p62 = scmp.eq.s32.totalorder %s21, 0
      %p63 = por %p61, %p62
      %p64 = scmp.ne.s32.totalorder %s52, %s53
      %p65 = scmp.eq.s32.totalorder %s22, 3
      %p66 = por %p64, %p65
      %p68 = scmp.ne.s32.totalorder %s53, %s67
      %p69 = scmp.eq.s32.totalorder %s22, 0
      %p70 = por %p68, %p69
      %s72 = sadd.s32 %s71, 1
      %p75 = scmp.eq.s32.totalorder %s16, 3
      %p76 = scmp.ne.s32.totalorder %s71, %s73
      %p77 = scmp.eq.s32.totalorder %s16, 0
      %p78 = por %p76, %p77
      %p79 = scmp.ne.s32.totalorder %s71, %s73
      %p80 = scmp.eq.s32.totalorder %s21, 3
      %p81 = por %p79, %p80
      %p82 = scmp.ne.s32.totalorder %s73, %s74
      %p83 = scmp.eq.s32.totalorder %s21, 0
      %p84 = por %p82, %p83
      %p85 = scmp.ne.s32.totalorder %s73, %s74
      %p86 = scmp.eq.s32.totalorder %s22, 3
      %p87 = por %p85, %p86
      %p89 = scmp.ne.s32.totalorder %s74, %s88
      %p90 = scmp.eq.s32.totalorder %s22, 0
      %p91 = por %p89, %p90
      %s93 = sadd.s32 %s92, 1
      %p96 = scmp.eq.s32.totalorder %s16, 3
      %p97 = scmp.ne.s32.totalorder %s92, %s94
      %p98 = scmp.eq.s32.totalorder %s16, 0
      %p99 = por %p97, %p98
      %p100 = scmp.ne.s32.totalorder %s92, %s94
      %p101 = scmp.eq.s32.totalorder %s21, 3
      %p102 = por %p100, %p101
      %p103 = scmp.ne.s32.totalorder %s94, %s95
      %p104 = scmp.eq.s32.totalorder %s21, 0
      %p105 = por %p103, %p104
      %p106 = scmp.ne.s32.totalorder %s94, %s95
      %p107 = scmp.eq.s32.totalorder %s22, 3
      %p108 = por %p106, %p107
      %p110 = scmp.ne.s32.totalorder %s95, %s109
      %p111 = scmp.eq.s32.totalorder %s22, 0
      %p112 = por %p110, %p111
      %s114 = sadd.s32 %s113, 1
      %p117 = scmp.eq.s32.totalorder %s16, 3
      %p118 = scmp.ne.s32.totalorder %s113, %s115
      %p119 = scmp.eq.s32.totalorder %s16, 0
      %p120 = por %p118, %p119
      %p121 = scmp.ne.s32.totalorder %s113, %s115
      %p122 = scmp.eq.s32.totalorder %s21, 3
      %p123 = por %p121, %p122
      %p124 = scmp.ne.s32.totalorder %s115, %s116
      %p125 = scmp.eq.s32.totalorder %s21, 0
      %p126 = por %p124, %p125
      %p127 = scmp.ne.s32.totalorder %s115, %s116
      %p128 = scmp.eq.s32.totalorder %s22, 3
      %p129 = por %p127, %p128
      %p131 = scmp.ne.s32.totalorder %s116, %s130
      %p132 = scmp.eq.s32.totalorder %s22, 0
      %p133 = por %p131, %p132
      %s135 = sadd.s32 %s134, 1
      %p138 = scmp.eq.s32.totalorder %s16, 3
      %p139 = scmp.ne.s32.totalorder %s134, %s136
      %p140 = scmp.eq.s32.totalorder %s16, 0
      %p141 = por %p139, %p140
      %p142 = scmp.ne.s32.totalorder %s134, %s136
      %p143 = scmp.eq.s32.totalorder %s21, 3
      %p144 = por %p142, %p143
      %p145 = scmp.ne.s32.totalorder %s136, %s137
      %p146 = scmp.eq.s32.totalorder %s21, 0
      %p147 = por %p145, %p146
      %p148 = scmp.ne.s32.totalorder %s136, %s137
      %p149 = scmp.eq.s32.totalorder %s22, 3
      %p150 = por %p148, %p149
      %p152 = scmp.ne.s32.totalorder %s137, %s151
      %p153 = scmp.eq.s32.totalorder %s22, 0
      %p154 = por %p152, %p153
      %s156 = sadd.s32 %s155, 1
      %p159 = scmp.eq.s32.totalorder %s16, 3
      %p160 = scmp.ne.s32.totalorder %s155, %s157
      %p161 = scmp.eq.s32.totalorder %s16, 0
      %p162 = por %p160, %p161
      %p163 = scmp.ne.s32.totalorder %s155, %s157
      %p164 = scmp.eq.s32.totalorder %s21, 3
      %p165 = por %p163, %p164
      %p166 = scmp.ne.s32.totalorder %s157, %s158
      %p167 = scmp.eq.s32.totalorder %s21, 0
      %p168 = por %p166, %p167
      %p169 = scmp.ne.s32.totalorder %s157, %s158
      %p170 = scmp.eq.s32.totalorder %s22, 3
      %p171 = por %p169, %p170
      %p173 = scmp.ne.s32.totalorder %s158, %s172
      %p174 = scmp.eq.s32.totalorder %s22, 0
      %p175 = por %p173, %p174
      %s176 = ssub.s32 %s16, %s23
      %p177 = scmp.eq.s32.totalorder %s176, 0
      %s179 = sadd.s32 %s178, 1
      %s180 = scalar_select %p177, %s178, %s179
      %p183 = pneg %p177
      %p184 = scmp.eq.s32.totalorder %s16, 3
      %p185 = por %p183, %p184
      %p186 = scmp.ne.s32.totalorder %s178, %s181
      %p187 = scmp.eq.s32.totalorder %s16, 0
      %p188 = por %p186, %p187
      %p189 = scmp.ne.s32.totalorder %s178, %s181
      %p190 = scmp.eq.s32.totalorder %s21, 3
      %p191 = por %p189, %p190
      %p192 = scmp.ne.s32.totalorder %s181, %s182
      %p193 = scmp.eq.s32.totalorder %s21, 0
      %p194 = por %p192, %p193
      %p195 = scmp.ne.s32.totalorder %s181, %s182
      %p196 = scmp.eq.s32.totalorder %s22, 3
      %p197 = por %p195, %p196
      %p199 = scmp.ne.s32.totalorder %s182, %s198
      %p200 = scmp.eq.s32.totalorder %s22, 0
      %p201 = por %p199, %p200
      %p202 = scmp.le.s32.totalorder 1, %s16
      %p203 = scmp.lt.s32.totalorder %s16, 5
      %p204 = pnand %p202, %p203
      %p205 = pneg %p204
      // Predicated region
      $region9: #{tpu_custom_call.1} parent=5 // pred_check
        _
      $region10: #{tpu_custom_call.1} parent=5 // pred_check_branch
        %207 = sbr.rel (%p204) target = $region12
      $region11: #{tpu_custom_call.1} parent=5 // pred_region
        %s208 = ssub.s32 %s16, 1
        // Predicated region
        $region13: #{tpu_custom_call.1} parent=11 // pred_check
          %p209 = pneg %p63
        $region14: #{tpu_custom_call.1} parent=11 // pred_check_branch
          %211 = sbr.rel (%p209) target = $region16
        $region15: #{tpu_custom_call.1} parent=11 // pred_region
          _
        $region16: #{tpu_custom_call.1} parent=11 // pred_fallthru
          _
        // Predicated region
        $region17: #{tpu_custom_call.1} parent=11 // pred_check
          %p212 = pneg %p84
        $region18: #{tpu_custom_call.1} parent=11 // pred_check_branch
          %214 = sbr.rel (%p212) target = $region20
        $region19: #{tpu_custom_call.1} parent=11 // pred_region
          _
        $region20: #{tpu_custom_call.1} parent=11 // pred_fallthru
          _
        // Predicated region
        $region21: #{tpu_custom_call.1} parent=11 // pred_check
          %p215 = pneg %p105
        $region22: #{tpu_custom_call.1} parent=11 // pred_check_branch
          %217 = sbr.rel (%p215) target = $region24
        $region23: #{tpu_custom_call.1} parent=11 // pred_region
          %s219 = ssub.s32 2560, 2560
          %220 = vsyncadd [#allocation4], %s219
          %s221 = sshll.u32 [#allocation3], 4
          %s222 = int_to_ptr.vmem [resolvable:$true] %s221
          %227 = dma.hbm_to_vmem [thread:$0]  %s3, 2560, %s222, [#allocation4], 64, 64, 4
        $region24: #{tpu_custom_call.1} parent=11 // pred_fallthru
          _
        // Predicated region
        $region25: #{tpu_custom_call.1} parent=11 // pred_check
          %p228 = pneg %p126
        $region26: #{tpu_custom_call.1} parent=11 // pred_check_branch
          %230 = sbr.rel (%p228) target = $region28
        $region27: #{tpu_custom_call.1} parent=11 // pred_region
          _
        $region28: #{tpu_custom_call.1} parent=11 // pred_fallthru
          _
        // Predicated region
        $region29: #{tpu_custom_call.1} parent=11 // pred_check
          %p231 = pneg %p147
        $region30: #{tpu_custom_call.1} parent=11 // pred_check_branch
          %233 = sbr.rel (%p231) target = $region32
        $region31: #{tpu_custom_call.1} parent=11 // pred_region
          _
        $region32: #{tpu_custom_call.1} parent=11 // pred_fallthru
          _
        // Predicated region
        $region33: #{tpu_custom_call.1} parent=11 // pred_check
          %p234 = pneg %p168
        $region34: #{tpu_custom_call.1} parent=11 // pred_check_branch
          %236 = sbr.rel (%p234) target = $region36
        $region35: #{tpu_custom_call.1} parent=11 // pred_region
          _
        $region36: #{tpu_custom_call.1} parent=11 // pred_fallthru
          _
      $region12: #{tpu_custom_call.1} parent=5 // pred_fallthru
        _
      %p237 = scmp.lt.s32.totalorder %s16, 4
      // Predicated region
      $region37: #{tpu_custom_call.1} parent=5 // pred_check
        %p238 = pneg %p237
      $region38: #{tpu_custom_call.1} parent=5 // pred_check_branch
        %240 = sbr.rel (%p238) target = $region40
      $region39: #{tpu_custom_call.1} parent=5 // pred_region
        // Predicated region
        $region41: #{tpu_custom_call.1} parent=39 // pred_check
          %p241 = pneg %p36
        $region42: #{tpu_custom_call.1} parent=39 // pred_check_branch
          %243 = sbr.rel (%p241) target = $region44
        $region43: #{tpu_custom_call.1} parent=39 // pred_region
          %s244 = smul.u32 2, %s16
          %p245 = scmp.lt.s32.totalorder %s244, 7
          %s246 = scalar_select %p245, %s244, 7
          %s247 = smul.addr %s246, 4
          %s248 = scalar_lea.vmem %s0, %s247
          %s249 = smul.u32 2, %s16
        $region44: #{tpu_custom_call.1} parent=39 // pred_fallthru
          _
      $region40: #{tpu_custom_call.1} parent=5 // pred_fallthru
        _
      %p250 = scmp.le.s32.totalorder 1, %s16
      %p251 = scmp.lt.s32.totalorder %s16, 5
      %p252 = pnand %p250, %p251
      %p253 = pneg %p252
      // Predicated region
      $region45: #{tpu_custom_call.1} parent=5 // pred_check
        _
      $region46: #{tpu_custom_call.1} parent=5 // pred_check_branch
        %255 = sbr.rel (%p252) target = $region48
      $region47: #{tpu_custom_call.1} parent=5 // pred_region
        %s256 = ssub.s32 %s16, 1
        // Predicated region
        $region49: #{tpu_custom_call.1} parent=47 // pred_check
          %p257 = pneg %p105
        $region50: #{tpu_custom_call.1} parent=47 // pred_check_branch
          %259 = sbr.rel (%p257) target = $region52
        $region51: #{tpu_custom_call.1} parent=47 // pred_region
          %260 = dma.done [#allocation4], 2560
        $region52: #{tpu_custom_call.1} parent=47 // pred_fallthru
          _
        %s261 = smul.u32 2, %s21
        %p262 = scmp.lt.s32.totalorder %s261, 7
        %s263 = scalar_select %p262, %s261, 7
        %s264 = smul.addr %s263, 4
        %s265 = scalar_lea.vmem %s0, %s264
        %p266 = pneg %p42
        %p267 = pneg %p39
        %p268 = pneg %p63
        %p269 = pneg %p60
        %p270 = pneg %p84
        %p271 = pneg %p81
        %p272 = pneg %p105
        %p273 = pneg %p102
        %p274 = pneg %p126
        %p275 = pneg %p123
        %p276 = pneg %p147
        %p277 = pneg %p144
        %p278 = pneg %p168
        %p279 = pneg %p165
        %p280 = pneg %p194
        %p281 = pneg %p191
        %s282 = smul.u32 2, %s21
        %p283 = scmp.lt.s32.totalorder %s282, 7
        %s284 = scalar_select %p283, %s282, 7
        %s285 = smul.addr %s284, 8
        %s286 = scalar_lea.vmem %s7, %s285
        %s287 = smul.u32 2, %s21
        %p288 = scmp.lt.s32.totalorder %s287, 7
        %s289 = scalar_select %p288, %s287, 7
        %s290 = smul.addr %s289, 4
        %s291 = scalar_lea.vmem %s0, %s290
        %s292 = smul.u32 2, %s21
        %s293 = smul.u32 2, %s21
        %p294 = scmp.lt.s32.totalorder %s293, 7
        %s295 = scalar_select %p294, %s293, 7
        %s296 = smul.addr %s295, 8
        %s297 = scalar_lea.vmem %s7, %s296
        %s298 = smul.u32 2, %s21
        %v300 = vld [vmem:[%s291] sm:$0xf]
        %v301 = vld [vmem:[%s291 + $0x4] sm:$0xf]
        %v302 = vld [vmem:[%s1] sm:$0xf]
        %v303 = vld [vmem:[%s1 + $0x4] sm:$0xf]
        %v304 = vld [vmem:[%s1 + $0x8] sm:$0xf]
        %v305 = vld [vmem:[%s1 + $0xc] sm:$0xf]
        %v306 = vld [vmem:[%s1 + $0x10] sm:$0xf]
        %v307 = vld [vmem:[%s1 + $0x14] sm:$0xf]
        %v308 = vld [vmem:[%s1 + $0x18] sm:$0xf]
        %v309 = vld [vmem:[%s1 + $0x1c] sm:$0xf]
        %v310 = vld [vmem:[%s1 + $0x20] sm:$0x3]
        %v311 = vld [vmem:[%s2] sm:$0x1]
        %v313 = vlaneseq
        %v314 = vshrl.u32 %v313, 7
        %v315 = vsub.s32 0, %v314
        %v316 = vrot.slane %v311, %v315
        %v320 = vunpack.c.l.b16 %v300
        %v321 = vunpack.c.l.b16 %v301
        %v322 = vpack.c.b16 %v321, %v320
        %v332 = vunpack.c.l.b16 %v302
        %v333 = vunpack.c.l.b16 %v303
        %v334 = vunpack.c.l.b16 %v304
        %v335 = vunpack.c.l.b16 %v305
        %v336 = vunpack.c.l.b16 %v306
        %v337 = vunpack.c.l.b16 %v307
        %v338 = vunpack.c.l.b16 %v308
        %v339 = vunpack.c.l.b16 %v309
        %v340 = vunpack.c.l.b16 %v310
        %v341 = vpack.c.b16 %v333, %v332
        %v342 = vpack.c.b16 %v335, %v334
        %v343 = vpack.c.b16 %v337, %v336
        %v344 = vpack.c.b16 %v339, %v338
        %v345 = vpack.c.b16 %v340, %v340
        %vm350 = vcmask 556032
        %v352 = vsel %vm350, %v322, 0
        %vm354 = vcmask 1041408
        %v356 = vsel %vm354, %v345, 0
        %358 = vmatprep.subr.bf16.mxu0 0
        %359 = vmatpush1.bf16.msra.mxu0 %v341
        %360 = vmatprep.subr.bf16.mxu0 0
        %361 = vmatpush1.bf16.msra.mxu0 %v342
        %362 = vmatprep.subr.bf16.mxu0 0
        %363 = vmatpush1.bf16.msra.mxu0 %v343
        %364 = vmatprep.subr.bf16.mxu0 0
        %365 = vmatpush1.bf16.msra.mxu0 %v344
        %366 = vmatprep.subr.bf16.mxu0 0
        %367 = vmatpush1.bf16.msra.mxu0 %v356
        %368 = vmatprep.subr.bf16.mxu0 0
        %369 = vmatpush1.bf16.msra.mxu0 0
        %370 = vmatprep.subr.bf16.mxu0 0
        %371 = vmatpush1.bf16.msra.mxu0 0
        %372 = vmatprep.subr.bf16.mxu0 0
        %373 = vmatpush1.bf16.msra.mxu0 0
        %374 = vmatprep.subr.bf16.mxu0 0
        %375 = vmatpush1.bf16.msra.mxu0 0
        %376 = vmatprep.subr.bf16.mxu0 0
        %377 = vmatpush1.bf16.msra.mxu0 0
        %378 = vmatprep.subr.bf16.mxu0 0
        %379 = vmatpush1.bf16.msra.mxu0 0
        %380 = vmatprep.subr.bf16.mxu0 0
        %381 = vmatpush1.bf16.msra.mxu0 0
        %382 = vmatprep.subr.bf16.mxu0 0
        %383 = vmatpush1.bf16.msra.mxu0 0
        %384 = vmatprep.subr.bf16.mxu0 0
        %385 = vmatpush1.bf16.msra.mxu0 0
        %386 = vmatprep.subr.bf16.mxu0 0
        %387 = vmatpush1.bf16.msra.mxu0 0
        %388 = vmatprep.subr.bf16.mxu0 0
        %389 = vmatpush1.bf16.msra.mxu0 0
        %390 = vmatprep.mubr.bf16.mxu0 0
        %391 = vmatmul.mubr.bf16.gmra.mrb[0].mxu0 %v352
        %v392 = vpop.f32.mrb[0].mxu0
        %v393 = vadd.f32 %v316, %v392
        %v394 = vpop.f32.mrb[0].mxu0
        %v395 = vpop.f32.mrb[0].mxu0
        %v396 = vadd.f32 %v316, %v395
        %v397 = vpop.f32.mrb[0].mxu0
        %398 = vdwg.mxu0
        %v399 = vmax.f32 %v393, 0.0
        %v400 = vmax.f32 %v396, 0.0
        %v401 = vld [vmem:[%s4] sm:$0x1]
        %v402 = vld [vmem:[%s4 + $0x1] sm:$0x1]
        %v403 = vld [vmem:[%s4 + $0x2] sm:$0x1]
        %v404 = vld [vmem:[%s4 + $0x3] sm:$0x1]
        %v405 = vld [vmem:[%s4 + $0x4] sm:$0x1]
        %v406 = vld [vmem:[%s4 + $0x5] sm:$0x1]
        %v407 = vld [vmem:[%s4 + $0x6] sm:$0x1]
        %v408 = vld [vmem:[%s4 + $0x7] sm:$0x1]
        %v409 = vld [vmem:[%s4 + $0x8] sm:$0x1]
        %v410 = vld [vmem:[%s4 + $0x9] sm:$0x1]
        %v411 = vpack.c.bf16 %v400, %v399
        %v412 = vld [vmem:[#allocation3] sm:$0xf]
        %v413 = vld [vmem:[#allocation3 + $0x4] sm:$0xf]
        %v414 = vld [vmem:[#allocation3 + $0x8] sm:$0xf]
        %v415 = vld [vmem:[#allocation3 + $0xc] sm:$0xf]
        %v417 = vlaneseq
        %v418 = vshrl.u32 %v417, 7
        %v419 = vsub.s32 0, %v418
        %v420 = vrot.slane %v401, %v419
        %v426 = vunpack.c.l.b16 %v412
        %v427 = vunpack.c.l.b16 %v413
        %v428 = vunpack.c.l.b16 %v414
        %v429 = vunpack.c.l.b16 %v415
        %v430 = vpack.c.b16 %v427, %v426
        %v431 = vpack.c.b16 %v429, %v428
        %vm434 = vcmask 261120
        %v436 = vsel %vm434, %v411, 0
        %438 = vmatprep.subr.bf16.mxu0 0
        %439 = vmatpush1.bf16.msra.mxu0 %v430
        %440 = vmatprep.subr.bf16.mxu0 0
        %441 = vmatpush1.bf16.msra.mxu0 %v431
        %442 = vmatprep.subr.bf16.mxu0 0
        %443 = vmatpush1.bf16.msra.mxu0 0
        %444 = vmatprep.subr.bf16.mxu0 0
        %445 = vmatpush1.bf16.msra.mxu0 0
        %446 = vmatprep.subr.bf16.mxu0 0
        %447 = vmatpush1.bf16.msra.mxu0 0
        %448 = vmatprep.subr.bf16.mxu0 0
        %449 = vmatpush1.bf16.msra.mxu0 0
        %450 = vmatprep.subr.bf16.mxu0 0
        %451 = vmatpush1.bf16.msra.mxu0 0
        %452 = vmatprep.subr.bf16.mxu0 0
        %453 = vmatpush1.bf16.msra.mxu0 0
        %454 = vmatprep.subr.bf16.mxu0 0
        %455 = vmatpush1.bf16.msra.mxu0 0
        %456 = vmatprep.subr.bf16.mxu0 0
        %457 = vmatpush1.bf16.msra.mxu0 0
        %458 = vmatprep.subr.bf16.mxu0 0
        %459 = vmatpush1.bf16.msra.mxu0 0
        %460 = vmatprep.subr.bf16.mxu0 0
        %461 = vmatpush1.bf16.msra.mxu0 0
        %462 = vmatprep.subr.bf16.mxu0 0
        %463 = vmatpush1.bf16.msra.mxu0 0
        %464 = vmatprep.subr.bf16.mxu0 0
        %465 = vmatpush1.bf16.msra.mxu0 0
        %466 = vmatprep.subr.bf16.mxu0 0
        %467 = vmatpush1.bf16.msra.mxu0 0
        %468 = vmatprep.subr.bf16.mxu0 0
        %469 = vmatpush1.bf16.msra.mxu0 0
        %470 = vmatprep.mubr.bf16.mxu0 0
        %471 = vmatmul.mubr.bf16.gmra.mrb[0].mxu0 %v436
        %v472 = vpop.f32.mrb[0].mxu0
        %v473 = vadd.f32 %v420, %v472
        %v474 = vpop.f32.mrb[0].mxu0
        %v475 = vpop.f32.mrb[0].mxu0
        %v476 = vadd.f32 %v420, %v475
        %v477 = vpop.f32.mrb[0].mxu0
        %478 = vdwg.mxu0
        %v479 = vmax.f32 %v473, 0.0
        %v480 = vmax.f32 %v476, 0.0
        %v481 = vpack.c.bf16 %v480, %v479
        %s482 = scalar_lea.vmem [#allocation3], 16
        %v483 = vld [vmem:[%s482] sm:$0xf]
        %v484 = vld [vmem:[%s482 + $0x4] sm:$0xf]
        %v485 = vld [vmem:[%s482 + $0x8] sm:$0xf]
        %v486 = vld [vmem:[%s482 + $0xc] sm:$0xf]
        %v488 = vlaneseq
        %v489 = vshrl.u32 %v488, 7
        %v490 = vsub.s32 0, %v489
        %v491 = vrot.slane %v402, %v490
        %v497 = vunpack.c.l.b16 %v483
        %v498 = vunpack.c.l.b16 %v484
        %v499 = vunpack.c.l.b16 %v485
        %v500 = vunpack.c.l.b16 %v486
        %v501 = vpack.c.b16 %v498, %v497
        %v502 = vpack.c.b16 %v500, %v499
        %v506 = vsel %vm434, %v481, 0
        %508 = vmatprep.subr.bf16.mxu0 0
        %509 = vmatpush1.bf16.msra.mxu0 %v501
        %510 = vmatprep.subr.bf16.mxu0 0
        %511 = vmatpush1.bf16.msra.mxu0 %v502
        %512 = vmatprep.subr.bf16.mxu0 0
        %513 = vmatpush1.bf16.msra.mxu0 0
        %514 = vmatprep.subr.bf16.mxu0 0
        %515 = vmatpush1.bf16.msra.mxu0 0
        %516 = vmatprep.subr.bf16.mxu0 0
        %517 = vmatpush1.bf16.msra.mxu0 0
        %518 = vmatprep.subr.bf16.mxu0 0
        %519 = vmatpush1.bf16.msra.mxu0 0
        %520 = vmatprep.subr.bf16.mxu0 0
        %521 = vmatpush1.bf16.msra.mxu0 0
        %522 = vmatprep.subr.bf16.mxu0 0
        %523 = vmatpush1.bf16.msra.mxu0 0
        %524 = vmatprep.subr.bf16.mxu0 0
        %525 = vmatpush1.bf16.msra.mxu0 0
        %526 = vmatprep.subr.bf16.mxu0 0
        %527 = vmatpush1.bf16.msra.mxu0 0
        %528 = vmatprep.subr.bf16.mxu0 0
        %529 = vmatpush1.bf16.msra.mxu0 0
        %530 = vmatprep.subr.bf16.mxu0 0
        %531 = vmatpush1.bf16.msra.mxu0 0
        %532 = vmatprep.subr.bf16.mxu0 0
        %533 = vmatpush1.bf16.msra.mxu0 0
        %534 = vmatprep.subr.bf16.mxu0 0
        %535 = vmatpush1.bf16.msra.mxu0 0
        %536 = vmatprep.subr.bf16.mxu0 0
        %537 = vmatpush1.bf16.msra.mxu0 0
        %538 = vmatprep.subr.bf16.mxu0 0
        %539 = vmatpush1.bf16.msra.mxu0 0
        %540 = vmatprep.mubr.bf16.mxu0 0
        %541 = vmatmul.mubr.bf16.gmra.mrb[0].mxu0 %v506
        %v542 = vpop.f32.mrb[0].mxu0
        %v543 = vadd.f32 %v491, %v542
        %v544 = vpop.f32.mrb[0].mxu0
        %v545 = vpop.f32.mrb[0].mxu0
        %v546 = vadd.f32 %v491, %v545
        %v547 = vpop.f32.mrb[0].mxu0
        %548 = vdwg.mxu0
        %v549 = vmax.f32 %v543, 0.0
        %v550 = vmax.f32 %v546, 0.0
        %v551 = vpack.c.bf16 %v550, %v549
        %s552 = scalar_lea.vmem [#allocation3], 32
        %v553 = vld [vmem:[%s552] sm:$0xf]
        %v554 = vld [vmem:[%s552 + $0x4] sm:$0xf]
        %v555 = vld [vmem:[%s552 + $0x8] sm:$0xf]
        %v556 = vld [vmem:[%s552 + $0xc] sm:$0xf]
        %v558 = vlaneseq
        %v559 = vshrl.u32 %v558, 7
        %v560 = vsub.s32 0, %v559
        %v561 = vrot.slane %v403, %v560
        %v567 = vunpack.c.l.b16 %v553
        %v568 = vunpack.c.l.b16 %v554
        %v569 = vunpack.c.l.b16 %v555
        %v570 = vunpack.c.l.b16 %v556
        %v571 = vpack.c.b16 %v568, %v567
        %v572 = vpack.c.b16 %v570, %v569
        %v576 = vsel %vm434, %v551, 0
        %578 = vmatprep.subr.bf16.mxu0 0
        %579 = vmatpush1.bf16.msra.mxu0 %v571
        %580 = vmatprep.subr.bf16.mxu0 0
        %581 = vmatpush1.bf16.msra.mxu0 %v572
        %582 = vmatprep.subr.bf16.mxu0 0
        %583 = vmatpush1.bf16.msra.mxu0 0
        %584 = vmatprep.subr.bf16.mxu0 0
        %585 = vmatpush1.bf16.msra.mxu0 0
        %586 = vmatprep.subr.bf16.mxu0 0
        %587 = vmatpush1.bf16.msra.mxu0 0
        %588 = vmatprep.subr.bf16.mxu0 0
        %589 = vmatpush1.bf16.msra.mxu0 0
        %590 = vmatprep.subr.bf16.mxu0 0
        %591 = vmatpush1.bf16.msra.mxu0 0
        %592 = vmatprep.subr.bf16.mxu0 0
        %593 = vmatpush1.bf16.msra.mxu0 0
        %594 = vmatprep.subr.bf16.mxu0 0
        %595 = vmatpush1.bf16.msra.mxu0 0
        %596 = vmatprep.subr.bf16.mxu0 0
        %597 = vmatpush1.bf16.msra.mxu0 0
        %598 = vmatprep.subr.bf16.mxu0 0
        %599 = vmatpush1.bf16.msra.mxu0 0
        %600 = vmatprep.subr.bf16.mxu0 0
        %601 = vmatpush1.bf16.msra.mxu0 0
        %602 = vmatprep.subr.bf16.mxu0 0
        %603 = vmatpush1.bf16.msra.mxu0 0
        %604 = vmatprep.subr.bf16.mxu0 0
        %605 = vmatpush1.bf16.msra.mxu0 0
        %606 = vmatprep.subr.bf16.mxu0 0
        %607 = vmatpush1.bf16.msra.mxu0 0
        %608 = vmatprep.subr.bf16.mxu0 0
        %609 = vmatpush1.bf16.msra.mxu0 0
        %610 = vmatprep.mubr.bf16.mxu0 0
        %611 = vmatmul.mubr.bf16.gmra.mrb[0].mxu0 %v576
        %v612 = vpop.f32.mrb[0].mxu0
        %v613 = vadd.f32 %v561, %v612
        %v614 = vpop.f32.mrb[0].mxu0
        %v615 = vpop.f32.mrb[0].mxu0
        %v616 = vadd.f32 %v561, %v615
        %v617 = vpop.f32.mrb[0].mxu0
        %618 = vdwg.mxu0
        %v619 = vmax.f32 %v613, 0.0
        %v620 = vmax.f32 %v616, 0.0
        %v621 = vpack.c.bf16 %v620, %v619
        %s622 = scalar_lea.vmem [#allocation3], 48
        %v623 = vld [vmem:[%s622] sm:$0xf]
        %v624 = vld [vmem:[%s622 + $0x4] sm:$0xf]
        %v625 = vld [vmem:[%s622 + $0x8] sm:$0xf]
        %v626 = vld [vmem:[%s622 + $0xc] sm:$0xf]
        %v628 = vlaneseq
        %v629 = vshrl.u32 %v628, 7
        %v630 = vsub.s32 0, %v629
        %v631 = vrot.slane %v404, %v630
        %v637 = vunpack.c.l.b16 %v623
        %v638 = vunpack.c.l.b16 %v624
        %v639 = vunpack.c.l.b16 %v625
        %v640 = vunpack.c.l.b16 %v626
        %v641 = vpack.c.b16 %v638, %v637
        %v642 = vpack.c.b16 %v640, %v639
        %v646 = vsel %vm434, %v621, 0
        %648 = vmatprep.subr.bf16.mxu0 0
        %649 = vmatpush1.bf16.msra.mxu0 %v641
        %650 = vmatprep.subr.bf16.mxu0 0
        %651 = vmatpush1.bf16.msra.mxu0 %v642
        %652 = vmatprep.subr.bf16.mxu0 0
        %653 = vmatpush1.bf16.msra.mxu0 0
        %654 = vmatprep.subr.bf16.mxu0 0
        %655 = vmatpush1.bf16.msra.mxu0 0
        %656 = vmatprep.subr.bf16.mxu0 0
        %657 = vmatpush1.bf16.msra.mxu0 0
        %658 = vmatprep.subr.bf16.mxu0 0
        %659 = vmatpush1.bf16.msra.mxu0 0
        %660 = vmatprep.subr.bf16.mxu0 0
        %661 = vmatpush1.bf16.msra.mxu0 0
        %662 = vmatprep.subr.bf16.mxu0 0
        %663 = vmatpush1.bf16.msra.mxu0 0
        %664 = vmatprep.subr.bf16.mxu0 0
        %665 = vmatpush1.bf16.msra.mxu0 0
        %666 = vmatprep.subr.bf16.mxu0 0
        %667 = vmatpush1.bf16.msra.mxu0 0
        %668 = vmatprep.subr.bf16.mxu0 0
        %669 = vmatpush1.bf16.msra.mxu0 0
        %670 = vmatprep.subr.bf16.mxu0 0
        %671 = vmatpush1.bf16.msra.mxu0 0
        %672 = vmatprep.subr.bf16.mxu0 0
        %673 = vmatpush1.bf16.msra.mxu0 0
        %674 = vmatprep.subr.bf16.mxu0 0
        %675 = vmatpush1.bf16.msra.mxu0 0
        %676 = vmatprep.subr.bf16.mxu0 0
        %677 = vmatpush1.bf16.msra.mxu0 0
        %678 = vmatprep.subr.bf16.mxu0 0
        %679 = vmatpush1.bf16.msra.mxu0 0
        %680 = vmatprep.mubr.bf16.mxu0 0
        %681 = vmatmul.mubr.bf16.gmra.mrb[0].mxu0 %v646
        %v682 = vpop.f32.mrb[0].mxu0
        %v683 = vadd.f32 %v631, %v682
        %v684 = vpop.f32.mrb[0].mxu0
        %v685 = vpop.f32.mrb[0].mxu0
        %v686 = vadd.f32 %v631, %v685
        %v687 = vpop.f32.mrb[0].mxu0
        %688 = vdwg.mxu0
        %v689 = vmax.f32 %v683, 0.0
        %v690 = vmax.f32 %v686, 0.0
        %v691 = vpack.c.bf16 %v690, %v689
        %s692 = scalar_lea.vmem [#allocation3], 64
        %v693 = vld [vmem:[%s692] sm:$0xf]
        %v694 = vld [vmem:[%s692 + $0x4] sm:$0xf]
        %v695 = vld [vmem:[%s692 + $0x8] sm:$0xf]
        %v696 = vld [vmem:[%s692 + $0xc] sm:$0xf]
        %v698 = vlaneseq
        %v699 = vshrl.u32 %v698, 7
        %v700 = vsub.s32 0, %v699
        %v701 = vrot.slane %v405, %v700
        %v707 = vunpack.c.l.b16 %v693
        %v708 = vunpack.c.l.b16 %v694
        %v709 = vunpack.c.l.b16 %v695
        %v710 = vunpack.c.l.b16 %v696
        %v711 = vpack.c.b16 %v708, %v707
        %v712 = vpack.c.b16 %v710, %v709
        %v716 = vsel %vm434, %v691, 0
        %718 = vmatprep.subr.bf16.mxu0 0
        %719 = vmatpush1.bf16.msra.mxu0 %v711
        %720 = vmatprep.subr.bf16.mxu0 0
        %721 = vmatpush1.bf16.msra.mxu0 %v712
        %722 = vmatprep.subr.bf16.mxu0 0
        %723 = vmatpush1.bf16.msra.mxu0 0
        %724 = vmatprep.subr.bf16.mxu0 0
        %725 = vmatpush1.bf16.msra.mxu0 0
        %726 = vmatprep.subr.bf16.mxu0 0
        %727 = vmatpush1.bf16.msra.mxu0 0
        %728 = vmatprep.subr.bf16.mxu0 0
        %729 = vmatpush1.bf16.msra.mxu0 0
        %730 = vmatprep.subr.bf16.mxu0 0
        %731 = vmatpush1.bf16.msra.mxu0 0
        %732 = vmatprep.subr.bf16.mxu0 0
        %733 = vmatpush1.bf16.msra.mxu0 0
        %734 = vmatprep.subr.bf16.mxu0 0
        %735 = vmatpush1.bf16.msra.mxu0 0
        %736 = vmatprep.subr.bf16.mxu0 0
        %737 = vmatpush1.bf16.msra.mxu0 0
        %738 = vmatprep.subr.bf16.mxu0 0
        %739 = vmatpush1.bf16.msra.mxu0 0
        %740 = vmatprep.subr.bf16.mxu0 0
        %741 = vmatpush1.bf16.msra.mxu0 0
        %742 = vmatprep.subr.bf16.mxu0 0
        %743 = vmatpush1.bf16.msra.mxu0 0
        %744 = vmatprep.subr.bf16.mxu0 0
        %745 = vmatpush1.bf16.msra.mxu0 0
        %746 = vmatprep.subr.bf16.mxu0 0
        %747 = vmatpush1.bf16.msra.mxu0 0
        %748 = vmatprep.subr.bf16.mxu0 0
        %749 = vmatpush1.bf16.msra.mxu0 0
        %750 = vmatprep.mubr.bf16.mxu0 0
        %751 = vmatmul.mubr.bf16.gmra.mrb[0].mxu0 %v716
        %v752 = vpop.f32.mrb[0].mxu0
        %v753 = vadd.f32 %v701, %v752
        %v754 = vpop.f32.mrb[0].mxu0
        %v755 = vpop.f32.mrb[0].mxu0
        %v756 = vadd.f32 %v701, %v755
        %v757 = vpop.f32.mrb[0].mxu0
        %758 = vdwg.mxu0
        %v759 = vmax.f32 %v753, 0.0
        %v760 = vmax.f32 %v756, 0.0
        %v761 = vpack.c.bf16 %v760, %v759
        %s762 = scalar_lea.vmem [#allocation3], 80
        %v763 = vld [vmem:[%s762] sm:$0xf]
        %v764 = vld [vmem:[%s762 + $0x4] sm:$0xf]
        %v765 = vld [vmem:[%s762 + $0x8] sm:$0xf]
        %v766 = vld [vmem:[%s762 + $0xc] sm:$0xf]
        %v768 = vlaneseq
        %v769 = vshrl.u32 %v768, 7
        %v770 = vsub.s32 0, %v769
        %v771 = vrot.slane %v406, %v770
        %v777 = vunpack.c.l.b16 %v763
        %v778 = vunpack.c.l.b16 %v764
        %v779 = vunpack.c.l.b16 %v765
        %v780 = vunpack.c.l.b16 %v766
        %v781 = vpack.c.b16 %v778, %v777
        %v782 = vpack.c.b16 %v780, %v779
        %v786 = vsel %vm434, %v761, 0
        %788 = vmatprep.subr.bf16.mxu0 0
        %789 = vmatpush1.bf16.msra.mxu0 %v781
        %790 = vmatprep.subr.bf16.mxu0 0
        %791 = vmatpush1.bf16.msra.mxu0 %v782
        %792 = vmatprep.subr.bf16.mxu0 0
        %793 = vmatpush1.bf16.msra.mxu0 0
        %794 = vmatprep.subr.bf16.mxu0 0
        %795 = vmatpush1.bf16.msra.mxu0 0
        %796 = vmatprep.subr.bf16.mxu0 0
        %797 = vmatpush1.bf16.msra.mxu0 0
        %798 = vmatprep.subr.bf16.mxu0 0
        %799 = vmatpush1.bf16.msra.mxu0 0
        %800 = vmatprep.subr.bf16.mxu0 0
        %801 = vmatpush1.bf16.msra.mxu0 0
        %802 = vmatprep.subr.bf16.mxu0 0
        %803 = vmatpush1.bf16.msra.mxu0 0
        %804 = vmatprep.subr.bf16.mxu0 0
        %805 = vmatpush1.bf16.msra.mxu0 0
        %806 = vmatprep.subr.bf16.mxu0 0
        %807 = vmatpush1.bf16.msra.mxu0 0
        %808 = vmatprep.subr.bf16.mxu0 0
        %809 = vmatpush1.bf16.msra.mxu0 0
        %810 = vmatprep.subr.bf16.mxu0 0
        %811 = vmatpush1.bf16.msra.mxu0 0
        %812 = vmatprep.subr.bf16.mxu0 0
        %813 = vmatpush1.bf16.msra.mxu0 0
        %814 = vmatprep.subr.bf16.mxu0 0
        %815 = vmatpush1.bf16.msra.mxu0 0
        %816 = vmatprep.subr.bf16.mxu0 0
        %817 = vmatpush1.bf16.msra.mxu0 0
        %818 = vmatprep.subr.bf16.mxu0 0
        %819 = vmatpush1.bf16.msra.mxu0 0
        %820 = vmatprep.mubr.bf16.mxu0 0
        %821 = vmatmul.mubr.bf16.gmra.mrb[0].mxu0 %v786
        %v822 = vpop.f32.mrb[0].mxu0
        %v823 = vadd.f32 %v771, %v822
        %v824 = vpop.f32.mrb[0].mxu0
        %v825 = vpop.f32.mrb[0].mxu0
        %v826 = vadd.f32 %v771, %v825
        %v827 = vpop.f32.mrb[0].mxu0
        %828 = vdwg.mxu0
        %v829 = vmax.f32 %v823, 0.0
        %v830 = vmax.f32 %v826, 0.0
        %v831 = vpack.c.bf16 %v830, %v829
        %s832 = scalar_lea.vmem [#allocation3], 96
        %v833 = vld [vmem:[%s832] sm:$0xf]
        %v834 = vld [vmem:[%s832 + $0x4] sm:$0xf]
        %v835 = vld [vmem:[%s832 + $0x8] sm:$0xf]
        %v836 = vld [vmem:[%s832 + $0xc] sm:$0xf]
        %v838 = vlaneseq
        %v839 = vshrl.u32 %v838, 7
        %v840 = vsub.s32 0, %v839
        %v841 = vrot.slane %v407, %v840
        %v847 = vunpack.c.l.b16 %v833
        %v848 = vunpack.c.l.b16 %v834
        %v849 = vunpack.c.l.b16 %v835
        %v850 = vunpack.c.l.b16 %v836
        %v851 = vpack.c.b16 %v848, %v847
        %v852 = vpack.c.b16 %v850, %v849
        %v856 = vsel %vm434, %v831, 0
        %858 = vmatprep.subr.bf16.mxu0 0
        %859 = vmatpush1.bf16.msra.mxu0 %v851
        %860 = vmatprep.subr.bf16.mxu0 0
        %861 = vmatpush1.bf16.msra.mxu0 %v852
        %862 = vmatprep.subr.bf16.mxu0 0
        %863 = vmatpush1.bf16.msra.mxu0 0
        %864 = vmatprep.subr.bf16.mxu0 0
        %865 = vmatpush1.bf16.msra.mxu0 0
        %866 = vmatprep.subr.bf16.mxu0 0
        %867 = vmatpush1.bf16.msra.mxu0 0
        %868 = vmatprep.subr.bf16.mxu0 0
        %869 = vmatpush1.bf16.msra.mxu0 0
        %870 = vmatprep.subr.bf16.mxu0 0
        %871 = vmatpush1.bf16.msra.mxu0 0
        %872 = vmatprep.subr.bf16.mxu0 0
        %873 = vmatpush1.bf16.msra.mxu0 0
        %874 = vmatprep.subr.bf16.mxu0 0
        %875 = vmatpush1.bf16.msra.mxu0 0
        %876 = vmatprep.subr.bf16.mxu0 0
        %877 = vmatpush1.bf16.msra.mxu0 0
        %878 = vmatprep.subr.bf16.mxu0 0
        %879 = vmatpush1.bf16.msra.mxu0 0
        %880 = vmatprep.subr.bf16.mxu0 0
        %881 = vmatpush1.bf16.msra.mxu0 0
        %882 = vmatprep.subr.bf16.mxu0 0
        %883 = vmatpush1.bf16.msra.mxu0 0
        %884 = vmatprep.subr.bf16.mxu0 0
        %885 = vmatpush1.bf16.msra.mxu0 0
        %886 = vmatprep.subr.bf16.mxu0 0
        %887 = vmatpush1.bf16.msra.mxu0 0
        %888 = vmatprep.subr.bf16.mxu0 0
        %889 = vmatpush1.bf16.msra.mxu0 0
        %890 = vmatprep.mubr.bf16.mxu0 0
        %891 = vmatmul.mubr.bf16.gmra.mrb[0].mxu0 %v856
        %v892 = vpop.f32.mrb[0].mxu0
        %v893 = vadd.f32 %v841, %v892
        %v894 = vpop.f32.mrb[0].mxu0
        %v895 = vpop.f32.mrb[0].mxu0
        %v896 = vadd.f32 %v841, %v895
        %v897 = vpop.f32.mrb[0].mxu0
        %898 = vdwg.mxu0
        %v899 = vmax.f32 %v893, 0.0
        %v900 = vmax.f32 %v896, 0.0
        %v901 = vpack.c.bf16 %v900, %v899
        %s902 = scalar_lea.vmem [#allocation3], 112
        %v903 = vld [vmem:[%s902] sm:$0xf]
        %v904 = vld [vmem:[%s902 + $0x4] sm:$0xf]
        %v905 = vld [vmem:[%s902 + $0x8] sm:$0xf]
        %v906 = vld [vmem:[%s902 + $0xc] sm:$0xf]
        %v908 = vlaneseq
        %v909 = vshrl.u32 %v908, 7
        %v910 = vsub.s32 0, %v909
        %v911 = vrot.slane %v408, %v910
        %v917 = vunpack.c.l.b16 %v903
        %v918 = vunpack.c.l.b16 %v904
        %v919 = vunpack.c.l.b16 %v905
        %v920 = vunpack.c.l.b16 %v906
        %v921 = vpack.c.b16 %v918, %v917
        %v922 = vpack.c.b16 %v920, %v919
        %v926 = vsel %vm434, %v901, 0
        %928 = vmatprep.subr.bf16.mxu0 0
        %929 = vmatpush1.bf16.msra.mxu0 %v921
        %930 = vmatprep.subr.bf16.mxu0 0
        %931 = vmatpush1.bf16.msra.mxu0 %v922
        %932 = vmatprep.subr.bf16.mxu0 0
        %933 = vmatpush1.bf16.msra.mxu0 0
        %934 = vmatprep.subr.bf16.mxu0 0
        %935 = vmatpush1.bf16.msra.mxu0 0
        %936 = vmatprep.subr.bf16.mxu0 0
        %937 = vmatpush1.bf16.msra.mxu0 0
        %938 = vmatprep.subr.bf16.mxu0 0
        %939 = vmatpush1.bf16.msra.mxu0 0
        %940 = vmatprep.subr.bf16.mxu0 0
        %941 = vmatpush1.bf16.msra.mxu0 0
        %942 = vmatprep.subr.bf16.mxu0 0
        %943 = vmatpush1.bf16.msra.mxu0 0
        %944 = vmatprep.subr.bf16.mxu0 0
        %945 = vmatpush1.bf16.msra.mxu0 0
        %946 = vmatprep.subr.bf16.mxu0 0
        %947 = vmatpush1.bf16.msra.mxu0 0
        %948 = vmatprep.subr.bf16.mxu0 0
        %949 = vmatpush1.bf16.msra.mxu0 0
        %950 = vmatprep.subr.bf16.mxu0 0
        %951 = vmatpush1.bf16.msra.mxu0 0
        %952 = vmatprep.subr.bf16.mxu0 0
        %953 = vmatpush1.bf16.msra.mxu0 0
        %954 = vmatprep.subr.bf16.mxu0 0
        %955 = vmatpush1.bf16.msra.mxu0 0
        %956 = vmatprep.subr.bf16.mxu0 0
        %957 = vmatpush1.bf16.msra.mxu0 0
        %958 = vmatprep.subr.bf16.mxu0 0
        %959 = vmatpush1.bf16.msra.mxu0 0
        %960 = vmatprep.mubr.bf16.mxu0 0
        %961 = vmatmul.mubr.bf16.gmra.mrb[0].mxu0 %v926
        %v962 = vpop.f32.mrb[0].mxu0
        %v963 = vadd.f32 %v911, %v962
        %v964 = vpop.f32.mrb[0].mxu0
        %v965 = vpop.f32.mrb[0].mxu0
        %v966 = vadd.f32 %v911, %v965
        %v967 = vpop.f32.mrb[0].mxu0
        %968 = vdwg.mxu0
        %v969 = vmax.f32 %v963, 0.0
        %v970 = vmax.f32 %v966, 0.0
        %v971 = vpack.c.bf16 %v970, %v969
        %s972 = scalar_lea.vmem [#allocation3], 128
        %v973 = vld [vmem:[%s972] sm:$0xf]
        %v974 = vld [vmem:[%s972 + $0x4] sm:$0xf]
        %v975 = vld [vmem:[%s972 + $0x8] sm:$0xf]
        %v976 = vld [vmem:[%s972 + $0xc] sm:$0xf]
        %v978 = vlaneseq
        %v979 = vshrl.u32 %v978, 7
        %v980 = vsub.s32 0, %v979
        %v981 = vrot.slane %v409, %v980
        %v987 = vunpack.c.l.b16 %v973
        %v988 = vunpack.c.l.b16 %v974
        %v989 = vunpack.c.l.b16 %v975
        %v990 = vunpack.c.l.b16 %v976
        %v991 = vpack.c.b16 %v988, %v987
        %v992 = vpack.c.b16 %v990, %v989
        %v996 = vsel %vm434, %v971, 0
        %998 = vmatprep.subr.bf16.mxu0 0
        %999 = vmatpush1.bf16.msra.mxu0 %v991
        %1000 = vmatprep.subr.bf16.mxu0 0
        %1001 = vmatpush1.bf16.msra.mxu0 %v992
        %1002 = vmatprep.subr.bf16.mxu0 0
        %1003 = vmatpush1.bf16.msra.mxu0 0
        %1004 = vmatprep.subr.bf16.mxu0 0
        %1005 = vmatpush1.bf16.msra.mxu0 0
        %1006 = vmatprep.subr.bf16.mxu0 0
        %1007 = vmatpush1.bf16.msra.mxu0 0
        %1008 = vmatprep.subr.bf16.mxu0 0
        %1009 = vmatpush1.bf16.msra.mxu0 0
        %1010 = vmatprep.subr.bf16.mxu0 0
        %1011 = vmatpush1.bf16.msra.mxu0 0
        %1012 = vmatprep.subr.bf16.mxu0 0
        %1013 = vmatpush1.bf16.msra.mxu0 0
        %1014 = vmatprep.subr.bf16.mxu0 0
        %1015 = vmatpush1.bf16.msra.mxu0 0
        %1016 = vmatprep.subr.bf16.mxu0 0
        %1017 = vmatpush1.bf16.msra.mxu0 0
        %1018 = vmatprep.subr.bf16.mxu0 0
        %1019 = vmatpush1.bf16.msra.mxu0 0
        %1020 = vmatprep.subr.bf16.mxu0 0
        %1021 = vmatpush1.bf16.msra.mxu0 0
        %1022 = vmatprep.subr.bf16.mxu0 0
        %1023 = vmatpush1.bf16.msra.mxu0 0
        %1024 = vmatprep.subr.bf16.mxu0 0
        %1025 = vmatpush1.bf16.msra.mxu0 0
        %1026 = vmatprep.subr.bf16.mxu0 0
        %1027 = vmatpush1.bf16.msra.mxu0 0
        %1028 = vmatprep.subr.bf16.mxu0 0
        %1029 = vmatpush1.bf16.msra.mxu0 0
        %1030 = vmatprep.mubr.bf16.mxu0 0
        %1031 = vmatmul.mubr.bf16.gmra.mrb[0].mxu0 %v996
        %v1032 = vpop.f32.mrb[0].mxu0
        %v1033 = vadd.f32 %v981, %v1032
        %v1034 = vpop.f32.mrb[0].mxu0
        %v1035 = vpop.f32.mrb[0].mxu0
        %v1036 = vadd.f32 %v981, %v1035
        %v1037 = vpop.f32.mrb[0].mxu0
        %1038 = vdwg.mxu0
        %v1039 = vmax.f32 %v1033, 0.0
        %v1040 = vmax.f32 %v1036, 0.0
        %v1041 = vpack.c.bf16 %v1040, %v1039
        %s1042 = scalar_lea.vmem [#allocation3], 144
        %v1043 = vld [vmem:[%s1042] sm:$0xf]
        %v1044 = vld [vmem:[%s1042 + $0x4] sm:$0xf]
        %v1045 = vld [vmem:[%s1042 + $0x8] sm:$0xf]
        %v1046 = vld [vmem:[%s1042 + $0xc] sm:$0xf]
        %v1048 = vlaneseq
        %v1049 = vshrl.u32 %v1048, 7
        %v1050 = vsub.s32 0, %v1049
        %v1051 = vrot.slane %v410, %v1050
        %v1057 = vunpack.c.l.b16 %v1043
        %v1058 = vunpack.c.l.b16 %v1044
        %v1059 = vunpack.c.l.b16 %v1045
        %v1060 = vunpack.c.l.b16 %v1046
        %v1061 = vpack.c.b16 %v1058, %v1057
        %v1062 = vpack.c.b16 %v1060, %v1059
        %v1066 = vsel %vm434, %v1041, 0
        %1068 = vmatprep.subr.bf16.mxu0 0
        %1069 = vmatpush1.bf16.msra.mxu0 %v1061
        %1070 = vmatprep.subr.bf16.mxu0 0
        %1071 = vmatpush1.bf16.msra.mxu0 %v1062
        %1072 = vmatprep.subr.bf16.mxu0 0
        %1073 = vmatpush1.bf16.msra.mxu0 0
        %1074 = vmatprep.subr.bf16.mxu0 0
        %1075 = vmatpush1.bf16.msra.mxu0 0
        %1076 = vmatprep.subr.bf16.mxu0 0
        %1077 = vmatpush1.bf16.msra.mxu0 0
        %1078 = vmatprep.subr.bf16.mxu0 0
        %1079 = vmatpush1.bf16.msra.mxu0 0
        %1080 = vmatprep.subr.bf16.mxu0 0
        %1081 = vmatpush1.bf16.msra.mxu0 0
        %1082 = vmatprep.subr.bf16.mxu0 0
        %1083 = vmatpush1.bf16.msra.mxu0 0
        %1084 = vmatprep.subr.bf16.mxu0 0
        %1085 = vmatpush1.bf16.msra.mxu0 0
        %1086 = vmatprep.subr.bf16.mxu0 0
        %1087 = vmatpush1.bf16.msra.mxu0 0
        %1088 = vmatprep.subr.bf16.mxu0 0
        %1089 = vmatpush1.bf16.msra.mxu0 0
        %1090 = vmatprep.subr.bf16.mxu0 0
        %1091 = vmatpush1.bf16.msra.mxu0 0
        %1092 = vmatprep.subr.bf16.mxu0 0
        %1093 = vmatpush1.bf16.msra.mxu0 0
        %1094 = vmatprep.subr.bf16.mxu0 0
        %1095 = vmatpush1.bf16.msra.mxu0 0
        %1096 = vmatprep.subr.bf16.mxu0 0
        %1097 = vmatpush1.bf16.msra.mxu0 0
        %1098 = vmatprep.subr.bf16.mxu0 0
        %1099 = vmatpush1.bf16.msra.mxu0 0
        %1100 = vmatprep.mubr.bf16.mxu0 0
        %1101 = vmatmul.mubr.bf16.gmra.mrb[0].mxu0 %v1066
        %v1102 = vpop.f32.mrb[0].mxu0
        %v1103 = vadd.f32 %v1051, %v1102
        %v1104 = vpop.f32.mrb[0].mxu0
        %v1105 = vpop.f32.mrb[0].mxu0
        %v1106 = vadd.f32 %v1051, %v1105
        %v1107 = vpop.f32.mrb[0].mxu0
        %1108 = vdwg.mxu0
        %v1109 = vmax.f32 %v1103, 0.0
        %v1110 = vmax.f32 %v1106, 0.0
        %v1111 = vld [vmem:[%s5] sm:$0x1]
        %v1113 = vlaneseq
        %v1114 = vshrl.u32 %v1113, 7
        %v1115 = vsub.s32 0, %v1114
        %v1116 = vrot.slane %v1111, %v1115
        %v1118 = vmul.f32 %v1109, %v1116
        %v1119 = vmul.f32 %v1110, %v1116
        %v1120 = vsel %vm434, %v1118, 0.0
        %1121 = vadd.xlane.f32.xlu0 %v1120
        %v1122 = vpop.xlane.xlu0 %1121
        %v1123 = vsel %vm434, %v1119, 0.0
        %1124 = vadd.xlane.f32.xlu0 %v1123
        %v1125 = vpop.xlane.xlu0 %1124
        %v1126 = vld [vmem:[#allocation2] sm:$0x1]
        %v1128 = vlaneseq
        %v1129 = vshrl.u32 %v1128, 7
        %v1130 = vsub.s32 0, %v1129
        %v1131 = vrot.slane %v1126, %v1130
        %v1133 = vadd.f32 %v1122, %v1131
        %v1134 = vadd.f32 %v1125, %v1131
        %vm1135 = vcmask 7168
        %1136 = vst.msk [vmem:[%s297] sm:$0xff] %vm1135, %v1133
        %1137 = vst.msk [vmem:[%s297 + $0x8] sm:$0xff] %vm1135, %v1134
        %s1138 = smul.u32 2, %s21
        %p1139 = scmp.lt.s32.totalorder %s1138, 7
        %s1140 = scalar_select %p1139, %s1138, 7
        %s1141 = smul.addr %s1140, 8
        %s1142 = scalar_lea.vmem %s7, %s1141
        // Predicated region
        $region53: #{tpu_custom_call.1} parent=47 // pred_check
          %p1143 = pneg %p191
        $region54: #{tpu_custom_call.1} parent=47 // pred_check_branch
          %1145 = sbr.rel (%p1143) target = $region56
        $region55: #{tpu_custom_call.1} parent=47 // pred_region
          %s1146 = smul.u32 2, %s21
        $region56: #{tpu_custom_call.1} parent=47 // pred_fallthru
          _
      $region48: #{tpu_custom_call.1} parent=5 // pred_fallthru
        _
      %p1147 = scmp.le.s32.totalorder 2, %s16
      // Predicated region
      $region57: #{tpu_custom_call.1} parent=5 // pred_check
        %p1148 = pneg %p1147
      $region58: #{tpu_custom_call.1} parent=5 // pred_check_branch
        %1150 = sbr.rel (%p1148) target = $region60
      $region59: #{tpu_custom_call.1} parent=5 // pred_region
        %s1151 = ssub.s32 %s16, 2
        // Predicated region
        $region61: #{tpu_custom_call.1} parent=59 // pred_check
          %p1152 = pneg %p197
        $region62: #{tpu_custom_call.1} parent=59 // pred_check_branch
          %1154 = sbr.rel (%p1152) target = $region64
        $region63: #{tpu_custom_call.1} parent=59 // pred_region
          %s1155 = smul.u32 2, %s22
          %p1156 = scmp.lt.s32.totalorder %s1155, 7
          %s1157 = scalar_select %p1156, %s1155, 7
          %s1158 = smul.addr %s1157, 8
          %s1159 = scalar_lea.vmem %s7, %s1158
        $region64: #{tpu_custom_call.1} parent=59 // pred_fallthru
          _
      $region60: #{tpu_custom_call.1} parent=5 // pred_fallthru
        _
    $region6: #{tpu_custom_call.1} parent=1 // loop_footer
      %s20 = sadd.s32 1, %s16
    $region7: #{tpu_custom_call.1} parent=1 // loop_footer_branch
      %15 = sbr.rel target = $region3
    $region8: #{tpu_custom_call.1} parent=1 // loop_exit
      _
    %1160 = vsyncpa [#allocation4], 1
    %s1161 = scalar_lea.sflag [#allocation4], 1
    %1162 = vsyncpa %s1161, 1

</llo_original>
